<compile_context>
chip_gen: v7x
topology: tpu7x:2x2x1
jax: 0.10.0
libtpu: 0.0.40
codegen_flags: <defaults>
</compile_context>

<pallas_src>
import jax
import jax.numpy as jnp
from jax.experimental import pallas as pl
from jax.experimental.pallas import tpu as pltpu

EPS = 1e-4
NEG_SLOPE = 0.01


def _round_up(x, m):
    return ((x + m - 1) // m) * m


def _linear_bn_lrelu_kernel(x_ref, w_ref, o_ref, acc_ref):
    """One (n-tile, k-tile) grid step.

    x_ref  : [B, TILE_K]       bf16  (full batch, one K tile)
    w_ref  : [TILE_N, TILE_K]  bf16  (PyTorch [out, in] layout, untransposed)
    o_ref  : [B, TILE_N]       f32
    acc_ref: [B, TILE_N]       f32 VMEM accumulator (persists across k steps)
    """
    k = pl.program_id(1)

    @pl.when(k == 0)
    def _init():
        acc_ref[...] = jnp.zeros_like(acc_ref)

    # Linear (no bias): x @ W^T on the MXU, bf16 inputs, f32 accumulation.
    # Contract the last dim of both operands -> no weight transpose anywhere.
    acc_ref[...] += jax.lax.dot_general(
        x_ref[...], w_ref[...],
        dimension_numbers=(((1,), (1,)), ((), ())),
        preferred_element_type=jnp.float32,
    )

    # Epilogue once per n-tile, at the last k step: training-mode BatchNorm1d
    # (affine=False) over the full batch + LeakyReLU, all in f32.
    @pl.when(k == pl.num_programs(1) - 1)
    def _epilogue():
        y = acc_ref[...]
        mean = jnp.mean(y, axis=0, keepdims=True)                    # batch mean
        centered = y - mean
        var = jnp.mean(centered * centered, axis=0, keepdims=True)   # biased var
        z = centered * jax.lax.rsqrt(var + EPS)                      # EUP rsqrt
        o_ref[...] = jnp.where(z >= 0, z, NEG_SLOPE * z).astype(o_ref.dtype)


def linear_bn_leaky_relu(x, weight, *, tile_n=256, tile_k=512):
    """x: [B, F_in] f32, weight: [F_out, F_in] f32 (PyTorch nn.Linear layout)."""
    B, F_in = x.shape
    F_out, F_in_w = weight.shape
    assert F_in_w == F_in

    # Lane-dense / MXU-friendly padding: N and K to multiples of 128, then to
    # multiples of the (clamped) tile sizes.
    k_pad = _round_up(F_in, 128)
    tile_k = min(tile_k, k_pad)
    k_pad = _round_up(k_pad, tile_k)

    n_pad = _round_up(F_out, 128)
    tile_n = min(tile_n, n_pad)
    n_pad = _round_up(n_pad, tile_n)

    # Zero-pad + cast to bf16 for the MXU (zeros don't perturb the matmul;
    # padded output columns are all-zero post-BN and sliced off below).
    x_p = jnp.pad(x, ((0, 0), (0, k_pad - F_in))).astype(jnp.bfloat16)
    w_p = jnp.pad(weight, ((0, n_pad - F_out), (0, k_pad - F_in))).astype(jnp.bfloat16)

    grid = (n_pad // tile_n, k_pad // tile_k)

    # Rough VMEM budget: accumulator + double-buffered input/output tiles.
    vmem_bytes = (
        B * tile_n * 4                 # f32 accumulator (scratch)
        + 2 * B * tile_k * 2           # x tiles, bf16, double-buffered
        + 2 * tile_n * tile_k * 2      # W tiles, bf16, double-buffered
        + 2 * B * tile_n * 4           # out tiles, f32, double-buffered
    )
    vmem_limit = min(max(2 * vmem_bytes, 32 * 1024 * 1024), 64 * 1024 * 1024)

    cost = pl.CostEstimate(
        flops=2 * B * k_pad * n_pad,
        transcendentals=0,
        bytes_accessed=B * k_pad * 2 + n_pad * k_pad * 2 + B * n_pad * 4,
    )

    out = pl.pallas_call(
        _linear_bn_lrelu_kernel,
        out_shape=jax.ShapeDtypeStruct((B, n_pad), jnp.float32),
        grid=grid,
        in_specs=[
            pl.BlockSpec((B, tile_k), lambda j, k: (0, k)),        # x
            pl.BlockSpec((tile_n, tile_k), lambda j, k: (j, k)),   # W ([out, in])
        ],
        out_specs=pl.BlockSpec((B, tile_n), lambda j, k: (0, j)),
        scratch_shapes=[pltpu.VMEM((B, tile_n), jnp.float32)],
        compiler_params=pltpu.CompilerParams(
            dimension_semantics=("parallel", "arbitrary"),
            vmem_limit_bytes=vmem_limit,
        ),
        cost_estimate=cost,
    )(x_p, w_p)

    return out[:, :F_out]


def reference(x, weight):
    # Matches the kernel's numerics: bf16-quantized matmul inputs, f32 stats.
    xq = x.astype(jnp.bfloat16).astype(jnp.float32)
    wq = weight.astype(jnp.bfloat16).astype(jnp.float32)
    y = jnp.dot(xq, wq.T, precision=jax.lax.Precision.HIGHEST)
    mean = jnp.mean(y, axis=0, keepdims=True)
    var = jnp.mean((y - mean) ** 2, axis=0, keepdims=True)
    z = (y - mean) * jax.lax.rsqrt(var + EPS)
    return jnp.where(z >= 0, z, NEG_SLOPE * z)


if __name__ == "__main__":
    key = jax.random.PRNGKey(0)
    k_x, k_w, k_x2, k_w2 = jax.random.split(key, 4)

    # Case 1: small shapes consistent with the MLP module.
    B, F_in, F_out = 8, 32, 64
    x = jax.random.normal(k_x, (B, F_in), dtype=jnp.float32)
    bound = 1.0 / (F_in ** 0.5)
    w = jax.random.uniform(k_w, (F_out, F_in), jnp.float32, -bound, bound)

    out = jax.block_until_ready(linear_bn_leaky_relu(x, w))
    ref = reference(x, w)
    assert out.shape == (B, F_out)
    assert jnp.allclose(out, ref, atol=2e-3, rtol=2e-3), "mismatch vs reference (case 1)"

    # Case 2: exercises the multi-tile (parallel N x reduction K) grid and
    # padding on both axes (N: 200 -> 256, K: 300 -> 384, grid = (2, 3)).
    B2, F_in2, F_out2 = 16, 300, 200
    x2 = jax.random.normal(k_x2, (B2, F_in2), dtype=jnp.float32)
    bound2 = 1.0 / (F_in2 ** 0.5)
    w2 = jax.random.uniform(k_w2, (F_out2, F_in2), jnp.float32, -bound2, bound2)

    out2 = jax.block_until_ready(
        linear_bn_leaky_relu(x2, w2, tile_n=128, tile_k=128))
    ref2 = reference(x2, w2)
    assert out2.shape == (B2, F_out2)
    assert jnp.allclose(out2, ref2, atol=2e-3, rtol=2e-3), "mismatch vs reference (case 2)"

    print("KERNEL_OK")
</pallas_src>

<mosaic_0001>
module attributes {stable_mosaic.version = 11 : i64} {
  func.func @_linear_bn_lrelu_kernel(%arg0: i32, %arg1: i32, %arg2: memref<8x128xbf16, #tpu.memory_space<vmem>>, %arg3: memref<128x128xbf16, #tpu.memory_space<vmem>>, %arg4: memref<8x128xf32, #tpu.memory_space<vmem>>, %arg5: memref<8x128xf32, #tpu.memory_space<vmem>>) attributes {dimension_semantics = [#tpu.dimension_semantics<parallel>, #tpu.dimension_semantics<arbitrary>], iteration_bounds = array<i64: 1, 1>, scalar_prefetch = 0 : i64, scratch_operands = 1 : i64, tpu.core_type = #tpu.core_type<tc>, window_params = [{transform_indices = @transform_0, window_bounds = array<i64: 8, 128>}, {transform_indices = @transform_1, window_bounds = array<i64: 128, 128>}, {transform_indices = @transform_2, window_bounds = array<i64: 8, 128>}]} {
    %c0_i32 = arith.constant 0 : i32
    %0 = arith.cmpi eq, %arg1, %c0_i32 : i32
    %1 = arith.extui %0 : i1 to i32
    %c0_i32_0 = arith.constant 0 : i32
    %2 = arith.cmpi ne, %1, %c0_i32_0 : i32
    scf.if %2 {
      %cst_10 = arith.constant 0.000000e+00 : f32
      %12 = vector.broadcast %cst_10 : f32 to vector<8x128xf32>
      %c0_11 = arith.constant 0 : index
      %c0_12 = arith.constant 0 : index
      %13 = vector.load %arg5[%c0_11, %c0_12] : memref<8x128xf32, #tpu.memory_space<vmem>>, vector<8x128xf32>
      tpu.vector_store %arg5[%c0_11, %c0_12], %12 {strides = array<i32>} : memref<8x128xf32, #tpu.memory_space<vmem>>, vector<8x128xf32>,
    } else {
    }
    %c0 = arith.constant 0 : index
    %c0_1 = arith.constant 0 : index
    %3 = vector.load %arg5[%c0, %c0_1] : memref<8x128xf32, #tpu.memory_space<vmem>>, vector<8x128xf32>
    %c0_2 = arith.constant 0 : index
    %c0_3 = arith.constant 0 : index
    %4 = vector.load %arg2[%c0_2, %c0_3] : memref<8x128xbf16, #tpu.memory_space<vmem>>, vector<8x128xbf16>
    %c0_4 = arith.constant 0 : index
    %c0_5 = arith.constant 0 : index
    %5 = vector.load %arg3[%c0_4, %c0_5] : memref<128x128xbf16, #tpu.memory_space<vmem>>, vector<128x128xbf16>
    %cst = arith.constant dense<0.000000e+00> : vector<8x128xf32>
    %6 = tpu.matmul %4, %5, %cst {dimension_numbers = #tpu.dot_dimension_numbers<[1], [1], [0], [0], [0, 0, 1, 0], [], []>} : vector<8x128xbf16>, vector<128x128xbf16>, vector<8x128xf32> -> vector<8x128xf32>
    %7 = arith.addf %3, %6 : vector<8x128xf32>
    %c0_6 = arith.constant 0 : index
    %c0_7 = arith.constant 0 : index
    %8 = vector.load %arg5[%c0_6, %c0_7] : memref<8x128xf32, #tpu.memory_space<vmem>>, vector<8x128xf32>
    tpu.vector_store %arg5[%c0_6, %c0_7], %7 {strides = array<i32>} : memref<8x128xf32, #tpu.memory_space<vmem>>, vector<8x128xf32>,
    %c0_i32_8 = arith.constant 0 : i32
    %9 = arith.cmpi eq, %arg1, %c0_i32_8 : i32
    %10 = arith.extui %9 : i1 to i32
    %c0_i32_9 = arith.constant 0 : i32
    %11 = arith.cmpi ne, %10, %c0_i32_9 : i32
    scf.if %11 {
      %c0_10 = arith.constant 0 : index
      %c0_11 = arith.constant 0 : index
      %12 = vector.load %arg5[%c0_10, %c0_11] : memref<8x128xf32, #tpu.memory_space<vmem>>, vector<8x128xf32>
      %cst_12 = arith.constant dense<0.000000e+00> : vector<128xf32>
      %13 = vector.multi_reduction <add>, %12, %cst_12 [0] : vector<8x128xf32> to vector<128xf32>
      %14 = vector.shape_cast %13 : vector<128xf32> to vector<1x128xf32>
      %cst_13 = arith.constant 8.000000e+00 : f32
      %15 = vector.broadcast %cst_13 : f32 to vector<1x128xf32>
      %16 = arith.divf %14, %15 : vector<1x128xf32>
      %17 = vector.broadcast %16 : vector<1x128xf32> to vector<8x128xf32>
      %18 = arith.subf %12, %17 : vector<8x128xf32>
      %19 = arith.mulf %18, %18 : vector<8x128xf32>
      %cst_14 = arith.constant dense<0.000000e+00> : vector<128xf32>
      %20 = vector.multi_reduction <add>, %19, %cst_14 [0] : vector<8x128xf32> to vector<128xf32>
      %21 = vector.shape_cast %20 : vector<128xf32> to vector<1x128xf32>
      %cst_15 = arith.constant 8.000000e+00 : f32
      %22 = vector.broadcast %cst_15 : f32 to vector<1x128xf32>
      %23 = arith.divf %21, %22 : vector<1x128xf32>
      %cst_16 = arith.constant 9.99999974E-5 : f32
      %24 = vector.broadcast %cst_16 : f32 to vector<1x128xf32>
      %25 = arith.addf %23, %24 : vector<1x128xf32>
      %26 = math.rsqrt %25 : vector<1x128xf32>
      %27 = vector.broadcast %26 : vector<1x128xf32> to vector<8x128xf32>
      %28 = arith.mulf %18, %27 : vector<8x128xf32>
      %cst_17 = arith.constant 0.000000e+00 : f32
      %29 = vector.broadcast %cst_17 : f32 to vector<8x128xf32>
      %30 = arith.cmpf oge, %28, %29 : vector<8x128xf32>
      %cst_18 = arith.constant 0.00999999977 : f32
      %31 = vector.broadcast %cst_18 : f32 to vector<8x128xf32>
      %32 = arith.mulf %31, %28 : vector<8x128xf32>
      %33 = arith.select %30, %28, %32 : vector<8x128xi1>, vector<8x128xf32>
      %c0_19 = arith.constant 0 : index
      %c0_20 = arith.constant 0 : index
      %34 = vector.load %arg4[%c0_19, %c0_20] : memref<8x128xf32, #tpu.memory_space<vmem>>, vector<8x128xf32>
      tpu.vector_store %arg4[%c0_19, %c0_20], %33 {strides = array<i32>} : memref<8x128xf32, #tpu.memory_space<vmem>>, vector<8x128xf32>,
    } else {
    }
    return
  }
  func.func @transform_0(%arg0: i32, %arg1: i32) -> (i32, i32) {
    %c0_i32 = arith.constant 0 : i32
    %c0_i32_0 = arith.constant 0 : i32
    return %c0_i32, %arg1 : i32, i32
  }
  func.func @transform_1(%arg0: i32, %arg1: i32) -> (i32, i32) {
    %c0_i32 = arith.constant 0 : i32
    return %arg0, %arg1 : i32, i32
  }
  func.func @transform_2(%arg0: i32, %arg1: i32) -> (i32, i32) {
    %c0_i32 = arith.constant 0 : i32
    %c0_i32_0 = arith.constant 0 : i32
    return %c0_i32, %arg0 : i32, i32
  }
}

</mosaic_0001>

<llo_original>
// kernel: tpu_custom_call.1
$region0: #{tpu_custom_call.1}
  #allocation0 [shape = 'u32[]', space=smem, size = 0x4, offset = 0x4, fixed_abs, tag = 'smem constant byte address 0x4 - core index']
  #allocation1 [shape = 'u32[144,128]{1,0:T(1,128)}', space=vmem, size = 0x12000, scoped, tag = 'internal scratch']
  #allocation2 [shape = 'f32[8,128]{1,0:T(8,128)}', space=vmem, size = 0x1000, scoped, tag = 'scratch operand']
  %s0 = inlined_call_operand.hbm [shape: bf16[8,128], index: 0, kind: input, shape index: {}]
  %s1 = inlined_call_operand.hbm [shape: bf16[128,128], index: 1, kind: input, shape index: {}]
  %s2 = inlined_call_operand.hbm [shape: f32[8,128], index: 2, kind: output, shape index: {}]
  %s3 = sld [smem:[#allocation0]]
  $region34: #{tpu_custom_call.1} parent=0
    _
  %s5 = ssub.s32 1, %s3
  %s6 = scalar_select 0, %s5, %s3
  $region1: #{tpu_custom_call.1} parent=0
    #allocation3 [shape = 'u8[2048]{0}', space=vmem, size = 0x800, scoped, tag = 'input window, operand 0, single buffered']
    #allocation4 [shape = 's32[1]{0}', space=sflag, size = 0x4, scoped, tag = 'scoped memory for tpu_custom_call.1']
    #allocation5 [shape = 's32[1]{0}', space=sflag, size = 0x4, scoped, tag = 'scoped memory for tpu_custom_call.1']
    #allocation6 [shape = 'u8[32768]{0}', space=vmem, size = 0x8000, scoped, tag = 'input window, operand 1, single buffered']
    #allocation7 [shape = 's32[1]{0}', space=sflag, size = 0x4, scoped, tag = 'scoped memory for tpu_custom_call.1']
    #allocation8 [shape = 'u8[4096]{0}', space=vmem, size = 0x1000, scoped, tag = 'output window, operand 0, single buffered']
    %7 = vsyncpa [#allocation4], 0
    %8 = vsyncpa [#allocation7], 0
    %9 = vsyncpa [#allocation5], 0
    // Predicated region
    $region2: #{tpu_custom_call.1} parent=1 // pred_check
      _
    $region3: #{tpu_custom_call.1} parent=1 // pred_check_branch
      %11 = sbr.rel (0) target = $region5
    $region4: #{tpu_custom_call.1} parent=1 // pred_region
      %s13 = ssub.s32 64, 64
      %14 = vsyncadd [#allocation4], %s13
      %s16 = sshll.u32 [#allocation3], 4
      %s17 = int_to_ptr.vmem [resolvable:$true] %s16
      %19 = dma.hbm_to_vmem [thread:$0]  %s0, 64, %s17, [#allocation4]
    $region5: #{tpu_custom_call.1} parent=1 // pred_fallthru
      _
    // Predicated region
    $region6: #{tpu_custom_call.1} parent=1 // pred_check
      _
    $region7: #{tpu_custom_call.1} parent=1 // pred_check_branch
      %21 = sbr.rel (0) target = $region9
    $region8: #{tpu_custom_call.1} parent=1 // pred_region
      %s23 = ssub.s32 1024, 1024
      %24 = vsyncadd [#allocation7], %s23
      %s25 = sshll.u32 [#allocation6], 4
      %s26 = int_to_ptr.vmem [resolvable:$true] %s25
      %31 = dma.hbm_to_vmem [thread:$0]  %s1, 1024, %s26, [#allocation7], 64, 64, 4
    $region9: #{tpu_custom_call.1} parent=1 // pred_fallthru
      _
    // Predicated region
    $region10: #{tpu_custom_call.1} parent=1 // pred_check
      _
    $region11: #{tpu_custom_call.1} parent=1 // pred_check_branch
      %33 = sbr.rel (0) target = $region13
    $region12: #{tpu_custom_call.1} parent=1 // pred_region
      %34 = dma.done [#allocation4], 64
    $region13: #{tpu_custom_call.1} parent=1 // pred_fallthru
      _
    // Predicated region
    $region14: #{tpu_custom_call.1} parent=1 // pred_check
      _
    $region15: #{tpu_custom_call.1} parent=1 // pred_check_branch
      %36 = sbr.rel (0) target = $region17
    $region16: #{tpu_custom_call.1} parent=1 // pred_region
      %37 = dma.done [#allocation7], 1024
    $region17: #{tpu_custom_call.1} parent=1 // pred_fallthru
      _
    %p39 = scmp.eq.s32.totalorder 0, 0
    // Predicated region
    $region18: #{tpu_custom_call.1} parent=1 // pred_check
      %p40 = pneg %p39
    $region19: #{tpu_custom_call.1} parent=1 // pred_check_branch
      %42 = sbr.rel (%p40) target = $region21
    $region20: #{tpu_custom_call.1} parent=1 // pred_region
      %43 = vst [vmem:[#allocation2] sm:$0xff] 0.0
    $region21: #{tpu_custom_call.1} parent=1 // pred_fallthru
      _
    %v44 = vld [vmem:[#allocation2] sm:$0xff]
    %v45 = vld [vmem:[#allocation3] sm:$0xf]
    %v46 = vld [vmem:[#allocation6] sm:$0xf]
    %v47 = vld [vmem:[#allocation6 + $0x4] sm:$0xf]
    %v48 = vld [vmem:[#allocation6 + $0x8] sm:$0xf]
    %v49 = vld [vmem:[#allocation6 + $0xc] sm:$0xf]
    %v50 = vld [vmem:[#allocation6 + $0x10] sm:$0xf]
    %v51 = vld [vmem:[#allocation6 + $0x14] sm:$0xf]
    %v52 = vld [vmem:[#allocation6 + $0x18] sm:$0xf]
    %v53 = vld [vmem:[#allocation6 + $0x1c] sm:$0xf]
    %v54 = vld [vmem:[#allocation6 + $0x20] sm:$0xf]
    %v55 = vld [vmem:[#allocation6 + $0x24] sm:$0xf]
    %v56 = vld [vmem:[#allocation6 + $0x28] sm:$0xf]
    %v57 = vld [vmem:[#allocation6 + $0x2c] sm:$0xf]
    %v58 = vld [vmem:[#allocation6 + $0x30] sm:$0xf]
    %v59 = vld [vmem:[#allocation6 + $0x34] sm:$0xf]
    %v60 = vld [vmem:[#allocation6 + $0x38] sm:$0xf]
    %v61 = vld [vmem:[#allocation6 + $0x3c] sm:$0xf]
    %v78 = vunpack.c.l.b16 %v46
    %v79 = vunpack.c.l.b16 %v47
    %v80 = vunpack.c.l.b16 %v48
    %v81 = vunpack.c.l.b16 %v49
    %v82 = vunpack.c.l.b16 %v50
    %v83 = vunpack.c.l.b16 %v51
    %v84 = vunpack.c.l.b16 %v52
    %v85 = vunpack.c.l.b16 %v53
    %v86 = vunpack.c.l.b16 %v54
    %v87 = vunpack.c.l.b16 %v55
    %v88 = vunpack.c.l.b16 %v56
    %v89 = vunpack.c.l.b16 %v57
    %v90 = vunpack.c.l.b16 %v58
    %v91 = vunpack.c.l.b16 %v59
    %v92 = vunpack.c.l.b16 %v60
    %v93 = vunpack.c.l.b16 %v61
    %v94 = vpack.c.b16 %v79, %v78
    %v95 = vpack.c.b16 %v81, %v80
    %v96 = vpack.c.b16 %v83, %v82
    %v97 = vpack.c.b16 %v85, %v84
    %v98 = vpack.c.b16 %v87, %v86
    %v99 = vpack.c.b16 %v89, %v88
    %v100 = vpack.c.b16 %v91, %v90
    %v101 = vpack.c.b16 %v93, %v92
    %110 = vmatprep.subr.bf16.mxu0 0
    %111 = vmatpush1.bf16.xpose.msra.mxu0 %v94
    %112 = vmatprep.subr.bf16.mxu0 0
    %113 = vmatpush1.bf16.xpose.msra.mxu0 %v95
    %114 = vmatprep.subr.bf16.mxu0 0
    %115 = vmatpush1.bf16.xpose.msra.mxu0 %v96
    %116 = vmatprep.subr.bf16.mxu0 0
    %117 = vmatpush1.bf16.xpose.msra.mxu0 %v97
    %118 = vmatprep.subr.bf16.mxu0 0
    %119 = vmatpush1.bf16.xpose.msra.mxu0 %v98
    %120 = vmatprep.subr.bf16.mxu0 0
    %121 = vmatpush1.bf16.xpose.msra.mxu0 %v99
    %122 = vmatprep.subr.bf16.mxu0 0
    %123 = vmatpush1.bf16.xpose.msra.mxu0 %v100
    %124 = vmatprep.subr.bf16.mxu0 0
    %125 = vmatpush1.bf16.xpose.msra.mxu0 %v101
    %126 = vmatprep.subr.bf16.mxu0 0
    %127 = vmatpush1.bf16.xpose.msra.mxu0 0
    %128 = vmatprep.subr.bf16.mxu0 0
    %129 = vmatpush1.bf16.xpose.msra.mxu0 0
    %130 = vmatprep.subr.bf16.mxu0 0
    %131 = vmatpush1.bf16.xpose.msra.mxu0 0
    %132 = vmatprep.subr.bf16.mxu0 0
    %133 = vmatpush1.bf16.xpose.msra.mxu0 0
    %134 = vmatprep.subr.bf16.mxu0 0
    %135 = vmatpush1.bf16.xpose.msra.mxu0 0
    %136 = vmatprep.subr.bf16.mxu0 0
    %137 = vmatpush1.bf16.xpose.msra.mxu0 0
    %138 = vmatprep.subr.bf16.mxu0 0
    %139 = vmatpush1.bf16.xpose.msra.mxu0 0
    %140 = vmatprep.subr.bf16.mxu0 0
    %141 = vmatpush1.bf16.xpose.msra.mxu0 0
    %142 = vmatprep.mubr.bf16.mxu0 0
    %143 = vmatmul.mubr.bf16.gmra.mrb[0].mxu0 %v45
    %v144 = vpop.f32.mrb[0].mxu0
    %v145 = vadd.f32 0.0, %v144
    %v146 = vpop.f32.mrb[0].mxu0
    %v147 = vpop.f32.mrb[0].mxu0
    %v148 = vpop.f32.mrb[0].mxu0
    %149 = vdwg.mxu0
    %v150 = vadd.f32 %v44, %v145
    %151 = vst [vmem:[#allocation2] sm:$0xff] %v150
    // Predicated region
    $region22: #{tpu_custom_call.1} parent=1 // pred_check
      %p152 = pneg %p39
    $region23: #{tpu_custom_call.1} parent=1 // pred_check_branch
      %154 = sbr.rel (%p152) target = $region25
    $region24: #{tpu_custom_call.1} parent=1 // pred_region
      %v155 = vld [vmem:[#allocation2] sm:$0xff]
      %v156 = vrot.slane %v155, 4
      %v157 = vadd.f32 %v155, %v156
      %v158 = vrot.slane %v157, 2
      %v159 = vadd.f32 %v157, %v158
      %v160 = vrot.slane %v159, 1
      %v161 = vadd.f32 %v159, %v160
      %v162 = vrcp.pop 8.0
      %v163 = vmul.f32 %v161, %v162
      %v164 = vsub.f32 %v155, %v163
      %v165 = vmul.f32 %v164, %v164
      %v166 = vrot.slane %v165, 4
      %v167 = vadd.f32 %v165, %v166
      %v168 = vrot.slane %v167, 2
      %v169 = vadd.f32 %v167, %v168
      %v170 = vrot.slane %v169, 1
      %v171 = vadd.f32 %v169, %v170
      %v172 = vmul.f32 %v171, %v162
      %v173 = vadd.f32 %v172, 0.0001
      %v174 = vrsqrt.pop %v173
      %v175 = vmul.f32 %v164, %v174
      %vm176 = vcmp.ge.f32.partialorder %v175, 0.0
      %v177 = vmul.f32 %v175, 0.01
      %v178 = vsel %vm176, %v175, %v177
      %179 = vst [vmem:[#allocation8] sm:$0xff] %v178
    $region25: #{tpu_custom_call.1} parent=1 // pred_fallthru
      _
    // Predicated region
    $region26: #{tpu_custom_call.1} parent=1 // pred_check
      _
    $region27: #{tpu_custom_call.1} parent=1 // pred_check_branch
      %181 = sbr.rel (0) target = $region29
    $region28: #{tpu_custom_call.1} parent=1 // pred_region
      %s183 = ssub.s32 128, 128
      %184 = vsyncadd [#allocation5], %s183
      %s186 = sshll.u32 [#allocation8], 4
      %s187 = int_to_ptr.vmem [resolvable:$true] %s186
      %189 = dma.vmem_to_hbm [thread:$0]  %s187, 128, %s2, [#allocation5]
    $region29: #{tpu_custom_call.1} parent=1 // pred_fallthru
      _
    // Predicated region
    $region30: #{tpu_custom_call.1} parent=1 // pred_check
      _
    $region31: #{tpu_custom_call.1} parent=1 // pred_check_branch
      %191 = sbr.rel (0) target = $region33
    $region32: #{tpu_custom_call.1} parent=1 // pred_region
      %192 = dma.done [#allocation5], 128
    $region33: #{tpu_custom_call.1} parent=1 // pred_fallthru
      _
    %193 = vsyncpa [#allocation4], 1
    %194 = vsyncpa [#allocation7], 1
    %195 = vsyncpa [#allocation5], 1

</llo_original>
